<compile_context>
chip_gen: v6e
topology: v6e:2x2x1
jax: 0.10.0
libtpu: 0.0.40
codegen_flags: <defaults>
</compile_context>

<pallas_src>
import jax
import jax.numpy as jnp
from jax.experimental import pallas as pl
from jax.experimental.pallas import tpu as pltpu


def twonn_kernel(x_ref, w1_ref, b1_ref, w2r_ref, b2_ref, out_ref):
    # x:   (TM, S)   w1: (S, H)   b1: (1, H)
    # w2r: (1, H)    b2: (1, 1)   out: (2, TM)   (lane axis = batch)
    x = x_ref[...]

    # First linear (MXU, f32 accumulate) + sigmoid via a single tanh EUP op.
    z1 = jnp.dot(x, w1_ref[...], preferred_element_type=jnp.float32) + b1_ref[...]
    h = 0.5 * jnp.tanh(0.5 * z1) + 0.5                      # (TM, H) = sigmoid(z1)

    # Single-row second layer, contracted over H with the result already
    # transposed -> (1, TM): lane-dense, no width-1 output column.
    z2 = jax.lax.dot_general(
        w2r_ref[...], h,
        dimension_numbers=(((1,), (1,)), ((), ())),
        preferred_element_type=jnp.float32,
    ) + b2_ref[...]                                         # (1, TM)
    y = 0.5 * jnp.tanh(0.5 * z2) + 0.5                      # (1, TM) = sigmoid(z2)

    # cat([y, 1-y]) along the sublane axis -> one full (2, TM) unmasked store.
    out_ref[...] = jnp.concatenate([y, 1.0 - y], axis=0).astype(out_ref.dtype)


def twonn_forward(x, w1, b1, w2, b2, *, block_m=8192):
    """x: (B, S); w1: (S, H)=W1^T; b1: (1, H); w2: (H, 1)=W2^T; b2: (1, 1).

    Returns (B, 2) == torch.cat([sigmoid(l2(sigmoid(l1(x)))), 1 - ...], dim=1).
    x may be f32 or bf16; accumulation / activation math is f32 in-kernel.
    """
    B, S = x.shape
    H = w1.shape[1]

    w2r = w2.T          # (1, H) single-row second layer
    # b2 stays (1, 1); broadcasts over the (1, TM) result in-kernel.

    # ---- batch tile selection (lane-aligned, grid >= 2 for megacore) --------
    B128 = pl.cdiv(B, 128) * 128
    if B128 <= block_m:
        TM = B128                                   # small batch: single tile
    else:
        # keep at least 2 grid steps so v7x's two TensorCores both get work
        TM = min(block_m, max(128, ((B128 // 2) // 128) * 128))
    Bp = pl.cdiv(B, TM) * TM
    if Bp != B:
        x = jnp.pad(x, ((0, Bp - B), (0, 0)))       # pad -> every block is full
    grid = (Bp // TM,)

    # ---- VMEM budget: tiles pad to 128 lanes; keep double-buffering alive ---
    pad_s = pl.cdiv(S, 128) * 128
    pad_h = pl.cdiv(H, 128) * 128
    vmem_est = (2 * TM * pad_s * x.dtype.itemsize   # x, double-buffered
                + TM * pad_h * 4                    # h intermediate (f32)
                + 2 * 8 * TM * 4                    # out (2->8 sublane pad), 2 bufs
                + (1 << 20))                        # weights/biases + slack
    vmem_limit = int(min(max(2 * vmem_est, 32 << 20), 48 << 20))

    flops = 2 * Bp * S * H + 2 * Bp * H + Bp        # two matmuls + 1-y subtract
    transcendentals = Bp * H + Bp                   # one tanh per sigmoid
    bytes_accessed = (x.dtype.itemsize * Bp * S
                      + 4 * (S * H + H + H + 1)     # weights/biases (once)
                      + 4 * 2 * Bp)                 # output

    out_t = pl.pallas_call(
        twonn_kernel,
        out_shape=jax.ShapeDtypeStruct((2, Bp), jnp.float32),
        grid_spec=pltpu.PrefetchScalarGridSpec(
            num_scalar_prefetch=0,
            grid=grid,
            in_specs=[
                # x streamed tile-by-tile (double-buffered by BlockSpec).
                pl.BlockSpec((TM, S), lambda i: (i, 0)),
                # Weights / biases: constant block index -> VMEM-resident.
                pl.BlockSpec((S, H), lambda i: (0, 0)),
                pl.BlockSpec((1, H), lambda i: (0, 0)),
                pl.BlockSpec((1, H), lambda i: (0, 0)),
                pl.BlockSpec((1, 1), lambda i: (0, 0)),
            ],
            out_specs=pl.BlockSpec((2, TM), lambda i: (0, i)),
        ),
        compiler_params=pltpu.CompilerParams(
            dimension_semantics=("parallel",),      # megacore on v7x; harmless elsewhere
            vmem_limit_bytes=vmem_limit,
        ),
        cost_estimate=pl.CostEstimate(
            flops=flops,
            transcendentals=transcendentals,
            bytes_accessed=bytes_accessed,
        ),
    )(x, w1, b1, w2r, b2)

    # Lane-dense (2, Bp) kernel output -> (B, 2) as the PyTorch module returns.
    # (If a downstream consumer can take (2, B) directly, return out_t[:, :B]
    #  instead and skip the transpose — it costs an extra XLA kernel.)
    return out_t[:, :B].T


def reference_forward(x, w1, b1, w2, b2):
    h = jax.nn.sigmoid(x @ w1 + b1)
    y = jax.nn.sigmoid(h @ w2 + b2)
    return jnp.concatenate([y, 1.0 - y], axis=1)


if __name__ == "__main__":
    # Module hyperparameters (small, deterministic).
    storage_dim = 32       # "storage" = input feature dim
    redundancy = 16        # hidden = 2 * redundancy = 32
    hidden = 2 * redundancy
    batch = 8

    key = jax.random.PRNGKey(0)
    kx, kw1, kb1, kw2, kb2, kx2 = jax.random.split(key, 6)

    # Deterministic parameter init (uniform, roughly PyTorch-Linear style bounds).
    bound1 = 1.0 / (storage_dim ** 0.5)
    bound2 = 1.0 / (hidden ** 0.5)
    x = jax.random.normal(kx, (batch, storage_dim), dtype=jnp.float32)
    w1 = jax.random.uniform(kw1, (storage_dim, hidden), minval=-bound1, maxval=bound1,
                            dtype=jnp.float32)          # (in, out) = W1^T
    b1 = jax.random.uniform(kb1, (1, hidden), minval=-bound1, maxval=bound1,
                            dtype=jnp.float32)
    w2 = jax.random.uniform(kw2, (hidden, 1), minval=-bound2, maxval=bound2,
                            dtype=jnp.float32)          # (in, out) = W2^T
    b2 = jax.random.uniform(kb2, (1, 1), minval=-bound2, maxval=bound2,
                            dtype=jnp.float32)

    # Small-batch path (single tile).
    out = twonn_forward(x, w1, b1, w2, b2)
    jax.block_until_ready(out)
    ref = reference_forward(x, w1, b1, w2, b2)
    assert out.shape == (batch, 2), out.shape
    # sigmoid is computed via tanh in-kernel -> identical math, ULP-level diffs.
    assert jnp.allclose(out, ref, atol=1e-5, rtol=1e-5), (out, ref)

    # Multi-tile + padding path (exercises grid > 1 and the tail slice).
    batch2 = 300
    x2 = jax.random.normal(kx2, (batch2, storage_dim), dtype=jnp.float32)
    out2 = twonn_forward(x2, w1, b1, w2, b2, block_m=256)
    jax.block_until_ready(out2)
    ref2 = reference_forward(x2, w1, b1, w2, b2)
    assert out2.shape == (batch2, 2), out2.shape
    assert jnp.allclose(out2, ref2, atol=1e-5, rtol=1e-5)

    print("KERNEL_OK")
</pallas_src>

<mosaic_0001>
module attributes {stable_mosaic.version = 11 : i64} {
  func.func @twonn_kernel(%arg0: i32, %arg1: memref<128x32xf32, #tpu.memory_space<vmem>>, %arg2: memref<32x32xf32, #tpu.memory_space<vmem>>, %arg3: memref<1x32xf32, #tpu.memory_space<vmem>>, %arg4: memref<1x32xf32, #tpu.memory_space<vmem>>, %arg5: memref<1x1xf32, #tpu.memory_space<vmem>>, %arg6: memref<2x128xf32, #tpu.memory_space<vmem>>) attributes {dimension_semantics = [#tpu.dimension_semantics<parallel>], iteration_bounds = array<i64: 1>, scalar_prefetch = 0 : i64, scratch_operands = 0 : i64, tpu.core_type = #tpu.core_type<tc>, window_params = [{transform_indices = @transform_0, window_bounds = array<i64: 128, 32>}, {pipeline_mode = #tpu.pipeline_mode<synchronous>, transform_indices = @transform_1, window_bounds = array<i64: 32, 32>}, {pipeline_mode = #tpu.pipeline_mode<synchronous>, transform_indices = @transform_2, window_bounds = array<i64: 1, 32>}, {pipeline_mode = #tpu.pipeline_mode<synchronous>, transform_indices = @transform_3, window_bounds = array<i64: 1, 32>}, {pipeline_mode = #tpu.pipeline_mode<synchronous>, transform_indices = @transform_4, window_bounds = array<i64: 1, 1>}, {transform_indices = @transform_5, window_bounds = array<i64: 2, 128>}]} {
    %c0 = arith.constant 0 : index
    %c0_0 = arith.constant 0 : index
    %0 = vector.load %arg1[%c0, %c0_0] : memref<128x32xf32, #tpu.memory_space<vmem>>, vector<128x32xf32>
    %c0_1 = arith.constant 0 : index
    %c0_2 = arith.constant 0 : index
    %1 = vector.load %arg2[%c0_1, %c0_2] : memref<32x32xf32, #tpu.memory_space<vmem>>, vector<32x32xf32>
    %cst = arith.constant dense<0.000000e+00> : vector<128x32xf32>
    %2 = tpu.matmul %0, %1, %cst {dimension_numbers = #tpu.dot_dimension_numbers<[1], [0], [0], [1], [0, 0, 1, 1], [], []>} : vector<128x32xf32>, vector<32x32xf32>, vector<128x32xf32> -> vector<128x32xf32>
    %c0_3 = arith.constant 0 : index
    %c0_4 = arith.constant 0 : index
    %3 = vector.load %arg3[%c0_3, %c0_4] : memref<1x32xf32, #tpu.memory_space<vmem>>, vector<1x32xf32>
    %4 = vector.broadcast %3 : vector<1x32xf32> to vector<128x32xf32>
    %5 = arith.addf %2, %4 : vector<128x32xf32>
    %cst_5 = arith.constant 5.000000e-01 : f32
    %6 = vector.broadcast %cst_5 : f32 to vector<128x32xf32>
    %7 = arith.mulf %6, %5 : vector<128x32xf32>
    %8 = math.tanh %7 : vector<128x32xf32>
    %cst_6 = arith.constant 5.000000e-01 : f32
    %9 = vector.broadcast %cst_6 : f32 to vector<128x32xf32>
    %10 = arith.mulf %9, %8 : vector<128x32xf32>
    %cst_7 = arith.constant 5.000000e-01 : f32
    %11 = vector.broadcast %cst_7 : f32 to vector<128x32xf32>
    %12 = arith.addf %10, %11 : vector<128x32xf32>
    %c0_8 = arith.constant 0 : index
    %c0_9 = arith.constant 0 : index
    %13 = vector.load %arg4[%c0_8, %c0_9] : memref<1x32xf32, #tpu.memory_space<vmem>>, vector<1x32xf32>
    %cst_10 = arith.constant dense<0.000000e+00> : vector<1x128xf32>
    %14 = tpu.matmul %13, %12, %cst_10 {dimension_numbers = #tpu.dot_dimension_numbers<[1], [1], [0], [0], [0, 0, 1, 0], [], []>} : vector<1x32xf32>, vector<128x32xf32>, vector<1x128xf32> -> vector<1x128xf32>
    %c0_11 = arith.constant 0 : index
    %c0_12 = arith.constant 0 : index
    %15 = vector.load %arg5[%c0_11, %c0_12] : memref<1x1xf32, #tpu.memory_space<vmem>>, vector<1x1xf32>
    %16 = vector.broadcast %15 : vector<1x1xf32> to vector<1x128xf32>
    %17 = arith.addf %14, %16 : vector<1x128xf32>
    %cst_13 = arith.constant 5.000000e-01 : f32
    %18 = vector.broadcast %cst_13 : f32 to vector<1x128xf32>
    %19 = arith.mulf %18, %17 : vector<1x128xf32>
    %20 = math.tanh %19 : vector<1x128xf32>
    %cst_14 = arith.constant 5.000000e-01 : f32
    %21 = vector.broadcast %cst_14 : f32 to vector<1x128xf32>
    %22 = arith.mulf %21, %20 : vector<1x128xf32>
    %cst_15 = arith.constant 5.000000e-01 : f32
    %23 = vector.broadcast %cst_15 : f32 to vector<1x128xf32>
    %24 = arith.addf %22, %23 : vector<1x128xf32>
    %cst_16 = arith.constant 1.000000e+00 : f32
    %25 = vector.broadcast %cst_16 : f32 to vector<1x128xf32>
    %26 = arith.subf %25, %24 : vector<1x128xf32>
    %27 = tpu.concatenate %24, %26 in 0 : vector<1x128xf32>, vector<1x128xf32> -> vector<2x128xf32>
    %c0_17 = arith.constant 0 : index
    %c0_18 = arith.constant 0 : index
    %28 = vector.load %arg6[%c0_17, %c0_18] : memref<2x128xf32, #tpu.memory_space<vmem>>, vector<2x128xf32>
    tpu.vector_store %arg6[%c0_17, %c0_18], %27 {strides = array<i32>} : memref<2x128xf32, #tpu.memory_space<vmem>>, vector<2x128xf32>,
    return
  }
  func.func @transform_0(%arg0: i32) -> (i32, i32) {
    %c0_i32 = arith.constant 0 : i32
    %c0_i32_0 = arith.constant 0 : i32
    return %arg0, %c0_i32 : i32, i32
  }
  func.func @transform_1(%arg0: i32) -> (i32, i32) {
    %c0_i32 = arith.constant 0 : i32
    %c0_i32_0 = arith.constant 0 : i32
    %c0_i32_1 = arith.constant 0 : i32
    return %c0_i32, %c0_i32_0 : i32, i32
  }
  func.func @transform_2(%arg0: i32) -> (i32, i32) {
    %c0_i32 = arith.constant 0 : i32
    %c0_i32_0 = arith.constant 0 : i32
    %c0_i32_1 = arith.constant 0 : i32
    return %c0_i32, %c0_i32_0 : i32, i32
  }
  func.func @transform_3(%arg0: i32) -> (i32, i32) {
    %c0_i32 = arith.constant 0 : i32
    %c0_i32_0 = arith.constant 0 : i32
    %c0_i32_1 = arith.constant 0 : i32
    return %c0_i32, %c0_i32_0 : i32, i32
  }
  func.func @transform_4(%arg0: i32) -> (i32, i32) {
    %c0_i32 = arith.constant 0 : i32
    %c0_i32_0 = arith.constant 0 : i32
    %c0_i32_1 = arith.constant 0 : i32
    return %c0_i32, %c0_i32_0 : i32, i32
  }
  func.func @transform_5(%arg0: i32) -> (i32, i32) {
    %c0_i32 = arith.constant 0 : i32
    %c0_i32_0 = arith.constant 0 : i32
    return %c0_i32, %arg0 : i32, i32
  }
}

</mosaic_0001>

<llo_original>
// kernel: tpu_custom_call.1
$region0: #{tpu_custom_call.1}
  #allocation0 [shape = 'u32[]', space=smem, size = 0x4, offset = 0x4, fixed_abs, tag = 'smem constant byte address 0x4 - core index']
  #allocation1 [shape = 'u32[144,128]{1,0:T(1,128)}', space=vmem, size = 0x12000, scoped, tag = 'internal scratch']
  #allocation2 [shape = 'f32[1,1]{1,0:T(1,128)S(1)}', space=vmem, size = 0x200, scoped, tag = 'scoped memory for tpu_custom_call.1']
  %s0 = inlined_call_operand.vmem [shape: f32[128,32], index: 0, kind: input, shape index: {}]
  %s1 = inlined_call_operand.vmem [shape: f32[32,32], index: 1, kind: input, shape index: {}]
  %s2 = inlined_call_operand.vmem [shape: f32[1,32], index: 2, kind: input, shape index: {}]
  %s3 = inlined_call_operand.vmem [shape: f32[1,32], index: 3, kind: input, shape index: {}]
  %s4 = inlined_call_operand.<no memory space> [shape: f32[1,1], index: 4, kind: input, shape index: {}]
  %s5 = inlined_call_operand.hbm [shape: f32[2,128], index: 5, kind: output, shape index: {}]
  %s6 = sld [smem:[#allocation0]]
  $region30: #{tpu_custom_call.1} parent=0
    _
  %s8 = ssub.s32 1, %s6
  %s9 = scalar_select 0, %s8, %s6
  %v10 = vstv %s4
  %11 = vst [vmem:[#allocation2] sm:$0x1] %v10
  $region1: #{tpu_custom_call.1} parent=0
    #allocation3 [shape = 'u8[1024]{0}', space=vmem, size = 0x400, scoped, tag = 'output window, operand 0, single buffered']
    #allocation4 [shape = 's32[1]{0}', space=sflag, size = 0x4, scoped, tag = 'scoped memory for tpu_custom_call.1']
    %12 = vsyncpa [#allocation4], 0
    // Predicated region
    $region2: #{tpu_custom_call.1} parent=1 // pred_check
      _
    $region3: #{tpu_custom_call.1} parent=1 // pred_check_branch
      %14 = sbr.rel (0) target = $region5
    $region4: #{tpu_custom_call.1} parent=1 // pred_region
      _
    $region5: #{tpu_custom_call.1} parent=1 // pred_fallthru
      _
    // Predicated region
    $region6: #{tpu_custom_call.1} parent=1 // pred_check
      _
    $region7: #{tpu_custom_call.1} parent=1 // pred_check_branch
      %16 = sbr.rel (0) target = $region9
    $region8: #{tpu_custom_call.1} parent=1 // pred_region
      _
    $region9: #{tpu_custom_call.1} parent=1 // pred_fallthru
      _
    // Predicated region
    $region10: #{tpu_custom_call.1} parent=1 // pred_check
      _
    $region11: #{tpu_custom_call.1} parent=1 // pred_check_branch
      %18 = sbr.rel (0) target = $region13
    $region12: #{tpu_custom_call.1} parent=1 // pred_region
      _
    $region13: #{tpu_custom_call.1} parent=1 // pred_fallthru
      _
    // Predicated region
    $region14: #{tpu_custom_call.1} parent=1 // pred_check
      _
    $region15: #{tpu_custom_call.1} parent=1 // pred_check_branch
      %20 = sbr.rel (0) target = $region17
    $region16: #{tpu_custom_call.1} parent=1 // pred_region
      _
    $region17: #{tpu_custom_call.1} parent=1 // pred_fallthru
      _
    // Predicated region
    $region18: #{tpu_custom_call.1} parent=1 // pred_check
      _
    $region19: #{tpu_custom_call.1} parent=1 // pred_check_branch
      %22 = sbr.rel (0) target = $region21
    $region20: #{tpu_custom_call.1} parent=1 // pred_region
      _
    $region21: #{tpu_custom_call.1} parent=1 // pred_fallthru
      _
    %v23 = vld [vmem:[%s0] sm:$0xff]
    %v24 = vld [vmem:[%s0 + $0x8] sm:$0xff]
    %v25 = vld [vmem:[%s0 + $0x10] sm:$0xff]
    %v26 = vld [vmem:[%s0 + $0x18] sm:$0xff]
    %v27 = vld [vmem:[%s0 + $0x20] sm:$0xff]
    %v28 = vld [vmem:[%s0 + $0x28] sm:$0xff]
    %v29 = vld [vmem:[%s0 + $0x30] sm:$0xff]
    %v30 = vld [vmem:[%s0 + $0x38] sm:$0xff]
    %v31 = vld [vmem:[%s0 + $0x40] sm:$0xff]
    %v32 = vld [vmem:[%s0 + $0x48] sm:$0xff]
    %v33 = vld [vmem:[%s0 + $0x50] sm:$0xff]
    %v34 = vld [vmem:[%s0 + $0x58] sm:$0xff]
    %v35 = vld [vmem:[%s0 + $0x60] sm:$0xff]
    %v36 = vld [vmem:[%s0 + $0x68] sm:$0xff]
    %v37 = vld [vmem:[%s0 + $0x70] sm:$0xff]
    %v38 = vld [vmem:[%s0 + $0x78] sm:$0xff]
    %v39 = vld [vmem:[%s1] sm:$0xff]
    %v40 = vld [vmem:[%s1 + $0x8] sm:$0xff]
    %v41 = vld [vmem:[%s1 + $0x10] sm:$0xff]
    %v42 = vld [vmem:[%s1 + $0x18] sm:$0xff]
    %v43 = vld [vmem:[%s2] sm:$0x1]
    %v45 = vlaneseq
    %v46 = vshrl.u32 %v45, 7
    %v47 = vsub.s32 0, %v46
    %v48 = vrot.slane %v43, %v47
    %vm50 = vcmask 261120
    %v52 = vsel %vm50, %v23, 0
    %v55 = vsel %vm50, %v24, 0
    %v58 = vsel %vm50, %v25, 0
    %v61 = vsel %vm50, %v26, 0
    %v64 = vsel %vm50, %v27, 0
    %v67 = vsel %vm50, %v28, 0
    %v70 = vsel %vm50, %v29, 0
    %v73 = vsel %vm50, %v30, 0
    %v76 = vsel %vm50, %v31, 0
    %v79 = vsel %vm50, %v32, 0
    %v82 = vsel %vm50, %v33, 0
    %v85 = vsel %vm50, %v34, 0
    %v88 = vsel %vm50, %v35, 0
    %v91 = vsel %vm50, %v36, 0
    %v94 = vsel %vm50, %v37, 0
    %v97 = vsel %vm50, %v38, 0
    %99 = vmatprep.subr.mxu0 0.0
    %100 = vmatpush1.msra.mxu0 0.0
    %101 = vmatprep.subr.mxu0 0.0
    %102 = vmatpush1.msra.mxu0 0.0
    %103 = vmatprep.subr.mxu0 0.0
    %104 = vmatpush1.msra.mxu0 0.0
    %105 = vmatprep.subr.mxu0 0.0
    %106 = vmatpush1.msra.mxu0 0.0
    %107 = vmatprep.subr.mxu0 0.0
    %108 = vmatpush1.msra.mxu0 0.0
    %109 = vmatprep.subr.mxu0 0.0
    %110 = vmatpush1.msra.mxu0 0.0
    %111 = vmatprep.subr.mxu0 0.0
    %112 = vmatpush1.msra.mxu0 0.0
    %113 = vmatprep.subr.mxu0 0.0
    %114 = vmatpush1.msra.mxu0 0.0
    %115 = vmatprep.subr.mxu0 0.0
    %116 = vmatpush1.msra.mxu0 0.0
    %117 = vmatprep.subr.mxu0 0.0
    %118 = vmatpush1.msra.mxu0 0.0
    %119 = vmatprep.subr.mxu0 0.0
    %120 = vmatpush1.msra.mxu0 0.0
    %121 = vmatprep.subr.mxu0 0.0
    %122 = vmatpush1.msra.mxu0 0.0
    %123 = vmatprep.subr.mxu0 0.0
    %124 = vmatpush1.msra.mxu0 %v42
    %125 = vmatprep.subr.mxu0 0.0
    %126 = vmatpush1.msra.mxu0 %v41
    %127 = vmatprep.subr.mxu0 0.0
    %128 = vmatpush1.msra.mxu0 %v40
    %129 = vmatprep.subr.mxu0 0.0
    %130 = vmatpush1.msra.mxu0 %v39
    %131 = vmatprep.subr.mxu0 0.0
    %132 = vmatpush2.msra.mxu0 0.0
    %133 = vmatprep.subr.mxu0 0.0
    %134 = vmatpush2.msra.mxu0 0.0
    %135 = vmatprep.subr.mxu0 0.0
    %136 = vmatpush2.msra.mxu0 0.0
    %137 = vmatprep.subr.mxu0 0.0
    %138 = vmatpush2.msra.mxu0 0.0
    %139 = vmatprep.subr.mxu0 0.0
    %140 = vmatpush2.msra.mxu0 0.0
    %141 = vmatprep.subr.mxu0 0.0
    %142 = vmatpush2.msra.mxu0 0.0
    %143 = vmatprep.subr.mxu0 0.0
    %144 = vmatpush2.msra.mxu0 0.0
    %145 = vmatprep.subr.mxu0 0.0
    %146 = vmatpush2.msra.mxu0 0.0
    %147 = vmatprep.subr.mxu0 0.0
    %148 = vmatpush2.msra.mxu0 0.0
    %149 = vmatprep.subr.mxu0 0.0
    %150 = vmatpush2.msra.mxu0 0.0
    %151 = vmatprep.subr.mxu0 0.0
    %152 = vmatpush2.msra.mxu0 0.0
    %153 = vmatprep.subr.mxu0 0.0
    %154 = vmatpush2.msra.mxu0 0.0
    %155 = vmatprep.subr.mxu0 0.0
    %156 = vmatpush2.msra.mxu0 0.0
    %157 = vmatprep.subr.mxu0 0.0
    %158 = vmatpush2.msra.mxu0 0.0
    %159 = vmatprep.subr.mxu0 0.0
    %160 = vmatpush2.msra.mxu0 0.0
    %161 = vmatprep.subr.mxu0 0.0
    %162 = vmatpush2.msra.mxu0 0.0
    %163 = vmatprep.mubr.f32.mxu0 0.0
    %164 = vmatmul.mubr.f32.gmra.mxu0 %v52
    %v165 = vpop.f32.mrf.mxu0
    %v166 = vadd.f32 %v48, %v165
    %v167 = vpop.f32.mrf.mxu0
    %168 = vmatprep.mubr.f32.mxu0 0.0
    %169 = vmatmul.mubr.f32.gmra.mxu0 %v55
    %v170 = vpop.f32.mrf.mxu0
    %v171 = vadd.f32 %v48, %v170
    %v172 = vpop.f32.mrf.mxu0
    %173 = vmatprep.mubr.f32.mxu0 0.0
    %174 = vmatmul.mubr.f32.gmra.mxu0 %v58
    %v175 = vpop.f32.mrf.mxu0
    %v176 = vadd.f32 %v48, %v175
    %v177 = vpop.f32.mrf.mxu0
    %178 = vmatprep.mubr.f32.mxu0 0.0
    %179 = vmatmul.mubr.f32.gmra.mxu0 %v61
    %v180 = vpop.f32.mrf.mxu0
    %v181 = vadd.f32 %v48, %v180
    %v182 = vpop.f32.mrf.mxu0
    %183 = vmatprep.mubr.f32.mxu0 0.0
    %184 = vmatmul.mubr.f32.gmra.mxu0 %v64
    %v185 = vpop.f32.mrf.mxu0
    %v186 = vadd.f32 %v48, %v185
    %v187 = vpop.f32.mrf.mxu0
    %188 = vmatprep.mubr.f32.mxu0 0.0
    %189 = vmatmul.mubr.f32.gmra.mxu0 %v67
    %v190 = vpop.f32.mrf.mxu0
    %v191 = vadd.f32 %v48, %v190
    %v192 = vpop.f32.mrf.mxu0
    %193 = vmatprep.mubr.f32.mxu0 0.0
    %194 = vmatmul.mubr.f32.gmra.mxu0 %v70
    %v195 = vpop.f32.mrf.mxu0
    %v196 = vadd.f32 %v48, %v195
    %v197 = vpop.f32.mrf.mxu0
    %198 = vmatprep.mubr.f32.mxu0 0.0
    %199 = vmatmul.mubr.f32.gmra.mxu0 %v73
    %v200 = vpop.f32.mrf.mxu0
    %v201 = vadd.f32 %v48, %v200
    %v202 = vpop.f32.mrf.mxu0
    %203 = vmatprep.mubr.f32.mxu0 0.0
    %204 = vmatmul.mubr.f32.gmra.mxu0 %v76
    %v205 = vpop.f32.mrf.mxu0
    %v206 = vadd.f32 %v48, %v205
    %v207 = vpop.f32.mrf.mxu0
    %208 = vmatprep.mubr.f32.mxu0 0.0
    %209 = vmatmul.mubr.f32.gmra.mxu0 %v79
    %v210 = vpop.f32.mrf.mxu0
    %v211 = vadd.f32 %v48, %v210
    %v212 = vpop.f32.mrf.mxu0
    %213 = vmatprep.mubr.f32.mxu0 0.0
    %214 = vmatmul.mubr.f32.gmra.mxu0 %v82
    %v215 = vpop.f32.mrf.mxu0
    %v216 = vadd.f32 %v48, %v215
    %v217 = vpop.f32.mrf.mxu0
    %218 = vmatprep.mubr.f32.mxu0 0.0
    %219 = vmatmul.mubr.f32.gmra.mxu0 %v85
    %v220 = vpop.f32.mrf.mxu0
    %v221 = vadd.f32 %v48, %v220
    %v222 = vpop.f32.mrf.mxu0
    %223 = vmatprep.mubr.f32.mxu0 0.0
    %224 = vmatmul.mubr.f32.gmra.mxu0 %v88
    %v225 = vpop.f32.mrf.mxu0
    %v226 = vadd.f32 %v48, %v225
    %v227 = vpop.f32.mrf.mxu0
    %228 = vmatprep.mubr.f32.mxu0 0.0
    %229 = vmatmul.mubr.f32.gmra.mxu0 %v91
    %v230 = vpop.f32.mrf.mxu0
    %v231 = vadd.f32 %v48, %v230
    %v232 = vpop.f32.mrf.mxu0
    %233 = vmatprep.mubr.f32.mxu0 0.0
    %234 = vmatmul.mubr.f32.gmra.mxu0 %v94
    %v235 = vpop.f32.mrf.mxu0
    %v236 = vadd.f32 %v48, %v235
    %v237 = vpop.f32.mrf.mxu0
    %238 = vmatprep.mubr.f32.mxu0 0.0
    %239 = vmatmul.mubr.f32.gmra.mxu0 %v97
    %v240 = vpop.f32.mrf.mxu0
    %v241 = vadd.f32 %v48, %v240
    %v242 = vpop.f32.mrf.mxu0
    %243 = vdwg.mxu0
    %v244 = vmul.f32 %v166, 0.5
    %v245 = vmul.f32 %v171, 0.5
    %v246 = vmul.f32 %v176, 0.5
    %v247 = vmul.f32 %v181, 0.5
    %v248 = vmul.f32 %v186, 0.5
    %v249 = vmul.f32 %v191, 0.5
    %v250 = vmul.f32 %v196, 0.5
    %v251 = vmul.f32 %v201, 0.5
    %v252 = vmul.f32 %v206, 0.5
    %v253 = vmul.f32 %v211, 0.5
    %v254 = vmul.f32 %v216, 0.5
    %v255 = vmul.f32 %v221, 0.5
    %v256 = vmul.f32 %v226, 0.5
    %v257 = vmul.f32 %v231, 0.5
    %v258 = vmul.f32 %v236, 0.5
    %v259 = vmul.f32 %v241, 0.5
    %v260 = vtanh.pop %v244
    %v261 = vtanh.pop %v245
    %v262 = vtanh.pop %v246
    %v263 = vtanh.pop %v247
    %v264 = vtanh.pop %v248
    %v265 = vtanh.pop %v249
    %v266 = vtanh.pop %v250
    %v267 = vtanh.pop %v251
    %v268 = vtanh.pop %v252
    %v269 = vtanh.pop %v253
    %v270 = vtanh.pop %v254
    %v271 = vtanh.pop %v255
    %v272 = vtanh.pop %v256
    %v273 = vtanh.pop %v257
    %v274 = vtanh.pop %v258
    %v275 = vtanh.pop %v259
    %v276 = vmul.f32 %v260, 0.5
    %v277 = vmul.f32 %v261, 0.5
    %v278 = vmul.f32 %v262, 0.5
    %v279 = vmul.f32 %v263, 0.5
    %v280 = vmul.f32 %v264, 0.5
    %v281 = vmul.f32 %v265, 0.5
    %v282 = vmul.f32 %v266, 0.5
    %v283 = vmul.f32 %v267, 0.5
    %v284 = vmul.f32 %v268, 0.5
    %v285 = vmul.f32 %v269, 0.5
    %v286 = vmul.f32 %v270, 0.5
    %v287 = vmul.f32 %v271, 0.5
    %v288 = vmul.f32 %v272, 0.5
    %v289 = vmul.f32 %v273, 0.5
    %v290 = vmul.f32 %v274, 0.5
    %v291 = vmul.f32 %v275, 0.5
    %v292 = vadd.f32 %v276, 0.5
    %v293 = vadd.f32 %v277, 0.5
    %v294 = vadd.f32 %v278, 0.5
    %v295 = vadd.f32 %v279, 0.5
    %v296 = vadd.f32 %v280, 0.5
    %v297 = vadd.f32 %v281, 0.5
    %v298 = vadd.f32 %v282, 0.5
    %v299 = vadd.f32 %v283, 0.5
    %v300 = vadd.f32 %v284, 0.5
    %v301 = vadd.f32 %v285, 0.5
    %v302 = vadd.f32 %v286, 0.5
    %v303 = vadd.f32 %v287, 0.5
    %v304 = vadd.f32 %v288, 0.5
    %v305 = vadd.f32 %v289, 0.5
    %v306 = vadd.f32 %v290, 0.5
    %v307 = vadd.f32 %v291, 0.5
    %v308 = vld [vmem:[%s3] sm:$0x1]
    %v309 = vld [vmem:[#allocation2] sm:$0x1]
    %311 = vset.pattern.permute.xlu0 0
    %312 = vperm.xlu0 %311, %v309
    %v313 = vpop.permute.xlu0 %312
    %v315 = vlaneseq
    %v316 = vshrl.u32 %v315, 7
    %v317 = vsub.s32 0, %v316
    %v318 = vrot.slane %v313, %v317
    %v320 = vsel %vm50, %v308, 0
    %v323 = vsel %vm50, %v292, 0
    %v326 = vsel %vm50, %v293, 0
    %v329 = vsel %vm50, %v294, 0
    %v332 = vsel %vm50, %v295, 0
    %v335 = vsel %vm50, %v296, 0
    %v338 = vsel %vm50, %v297, 0
    %v341 = vsel %vm50, %v298, 0
    %v344 = vsel %vm50, %v299, 0
    %v347 = vsel %vm50, %v300, 0
    %v350 = vsel %vm50, %v301, 0
    %v353 = vsel %vm50, %v302, 0
    %v356 = vsel %vm50, %v303, 0
    %v359 = vsel %vm50, %v304, 0
    %v362 = vsel %vm50, %v305, 0
    %v365 = vsel %vm50, %v306, 0
    %v368 = vsel %vm50, %v307, 0
    %370 = vmatprep.subr.mxu0 0.0
    %371 = vmatpush1.xpose.msra.mxu0 %v368
    %372 = vmatprep.subr.mxu0 0.0
    %373 = vmatpush1.xpose.msra.mxu0 %v365
    %374 = vmatprep.subr.mxu0 0.0
    %375 = vmatpush1.xpose.msra.mxu0 %v362
    %376 = vmatprep.subr.mxu0 0.0
    %377 = vmatpush1.xpose.msra.mxu0 %v359
    %378 = vmatprep.subr.mxu0 0.0
    %379 = vmatpush1.xpose.msra.mxu0 %v356
    %380 = vmatprep.subr.mxu0 0.0
    %381 = vmatpush1.xpose.msra.mxu0 %v353
    %382 = vmatprep.subr.mxu0 0.0
    %383 = vmatpush1.xpose.msra.mxu0 %v350
    %384 = vmatprep.subr.mxu0 0.0
    %385 = vmatpush1.xpose.msra.mxu0 %v347
    %386 = vmatprep.subr.mxu0 0.0
    %387 = vmatpush1.xpose.msra.mxu0 %v344
    %388 = vmatprep.subr.mxu0 0.0
    %389 = vmatpush1.xpose.msra.mxu0 %v341
    %390 = vmatprep.subr.mxu0 0.0
    %391 = vmatpush1.xpose.msra.mxu0 %v338
    %392 = vmatprep.subr.mxu0 0.0
    %393 = vmatpush1.xpose.msra.mxu0 %v335
    %394 = vmatprep.subr.mxu0 0.0
    %395 = vmatpush1.xpose.msra.mxu0 %v332
    %396 = vmatprep.subr.mxu0 0.0
    %397 = vmatpush1.xpose.msra.mxu0 %v329
    %398 = vmatprep.subr.mxu0 0.0
    %399 = vmatpush1.xpose.msra.mxu0 %v326
    %400 = vmatprep.subr.mxu0 0.0
    %401 = vmatpush1.xpose.msra.mxu0 %v323
    %402 = vmatprep.subr.mxu0 0.0
    %403 = vmatpush2.xpose.msra.mxu0 0.0
    %404 = vmatprep.subr.mxu0 0.0
    %405 = vmatpush2.xpose.msra.mxu0 0.0
    %406 = vmatprep.subr.mxu0 0.0
    %407 = vmatpush2.xpose.msra.mxu0 0.0
    %408 = vmatprep.subr.mxu0 0.0
    %409 = vmatpush2.xpose.msra.mxu0 0.0
    %410 = vmatprep.subr.mxu0 0.0
    %411 = vmatpush2.xpose.msra.mxu0 0.0
    %412 = vmatprep.subr.mxu0 0.0
    %413 = vmatpush2.xpose.msra.mxu0 0.0
    %414 = vmatprep.subr.mxu0 0.0
    %415 = vmatpush2.xpose.msra.mxu0 0.0
    %416 = vmatprep.subr.mxu0 0.0
    %417 = vmatpush2.xpose.msra.mxu0 0.0
    %418 = vmatprep.subr.mxu0 0.0
    %419 = vmatpush2.xpose.msra.mxu0 0.0
    %420 = vmatprep.subr.mxu0 0.0
    %421 = vmatpush2.xpose.msra.mxu0 0.0
    %422 = vmatprep.subr.mxu0 0.0
    %423 = vmatpush2.xpose.msra.mxu0 0.0
    %424 = vmatprep.subr.mxu0 0.0
    %425 = vmatpush2.xpose.msra.mxu0 0.0
    %426 = vmatprep.subr.mxu0 0.0
    %427 = vmatpush2.xpose.msra.mxu0 0.0
    %428 = vmatprep.subr.mxu0 0.0
    %429 = vmatpush2.xpose.msra.mxu0 0.0
    %430 = vmatprep.subr.mxu0 0.0
    %431 = vmatpush2.xpose.msra.mxu0 0.0
    %432 = vmatprep.subr.mxu0 0.0
    %433 = vmatpush2.xpose.msra.mxu0 0.0
    %434 = vmatprep.mubr.f32.mxu0 0.0
    %435 = vmatmul.mubr.f32.gmra.mxu0 %v320
    %v436 = vpop.f32.mrf.mxu0
    %v437 = vadd.f32 %v318, %v436
    %v438 = vpop.f32.mrf.mxu0
    %439 = vdwg.mxu0
    %v440 = vmul.f32 %v437, 0.5
    %v441 = vtanh.pop %v440
    %v442 = vmul.f32 %v441, 0.5
    %v443 = vadd.f32 %v442, 0.5
    %v444 = vsub.f32 1.0, %v443
    %v446 = vrot.slane %v444, 7
    %vm448 = vcmask 1040384
    %v449 = vsel %vm448, %v443, %v446
    %450 = vst [vmem:[#allocation3] sm:$0x3] %v449
    // Predicated region
    $region22: #{tpu_custom_call.1} parent=1 // pred_check
      _
    $region23: #{tpu_custom_call.1} parent=1 // pred_check_branch
      %452 = sbr.rel (0) target = $region25
    $region24: #{tpu_custom_call.1} parent=1 // pred_region
      %s454 = ssub.s32 32, 32
      %455 = vsyncadd [#allocation4], %s454
      %s457 = sshll.u32 [#allocation3], 4
      %s458 = int_to_ptr.vmem [resolvable:$true] %s457
      %460 = dma.vmem_to_hbm [thread:$0]  %s458, 32, %s5, [#allocation4]
    $region25: #{tpu_custom_call.1} parent=1 // pred_fallthru
      _
    // Predicated region
    $region26: #{tpu_custom_call.1} parent=1 // pred_check
      _
    $region27: #{tpu_custom_call.1} parent=1 // pred_check_branch
      %462 = sbr.rel (0) target = $region29
    $region28: #{tpu_custom_call.1} parent=1 // pred_region
      %463 = dma.done [#allocation4], 32
    $region29: #{tpu_custom_call.1} parent=1 // pred_fallthru
      _
    %464 = vsyncpa [#allocation4], 1

</llo_original>
